<compile_context>
chip_gen: v7x
topology: tpu7x:2x2x1
jax: 0.10.0
libtpu: 0.0.40
codegen_flags: <defaults>
</compile_context>

<pallas_src>
import functools

import jax
import jax.numpy as jnp
from jax.experimental import pallas as pl
from jax.experimental.pallas import tpu as pltpu


# ------------------------------- small helpers --------------------------------

def _round_up(v, m):
    return (v + m - 1) // m * m


def _pad2d(a, rows, cols):
    return jnp.pad(a, ((0, rows - a.shape[0]), (0, cols - a.shape[1])))


# ------------------------- glue: normalized adjacency -------------------------

def build_norm_adj(edge_index, num_nodes, edge_weight=None):
    """Dense A_hat[tgt, src] = deg^-1/2[tgt] * w * deg^-1/2[src], with self-loops (PyG GCNConv)."""
    src, dst = edge_index[0], edge_index[1]
    if edge_weight is None:
        edge_weight = jnp.ones((src.shape[0],), dtype=jnp.float32)
    loop = jnp.arange(num_nodes, dtype=src.dtype)
    src = jnp.concatenate([src, loop])
    dst = jnp.concatenate([dst, loop])
    w = jnp.concatenate([edge_weight, jnp.ones((num_nodes,), dtype=jnp.float32)])
    adj = jnp.zeros((num_nodes, num_nodes), dtype=jnp.float32).at[dst, src].add(w)
    deg = adj.sum(axis=1)
    dinv = jnp.where(deg > 0, 1.0 / jnp.sqrt(deg), 0.0)
    return dinv[:, None] * adj * dinv[None, :]


# ------------------------------ Pallas kernel --------------------------------

def vgcn_encoder_kernel(n_slabs, a_hbm, x_ref,
                        w1_ref, b1_ref,
                        w2_ref, b2_ref,
                        wh_ref, bh_ref,
                        out_ref,
                        a_vmem, dma_sems, h_scratch):
    n_p = a_vmem.shape[0]
    slab = n_p // n_slabs  # static; n_p % n_slabs == 0 guaranteed by the wrapper

    def slab_copy(s):
        return pltpu.make_async_copy(a_hbm.at[pl.ds(s * slab, slab)],
                                     a_vmem.at[pl.ds(s * slab, slab)],
                                     dma_sems.at[s])

    # Issue all row-slab DMAs of the normalized adjacency up front (per-slab semaphores).
    for s in range(n_slabs):
        slab_copy(s).start()

    # conv1 feature transform: X @ W1 (does not need A) overlaps the start of the A copy.
    p1 = jnp.dot(x_ref[...], w1_ref[...],
                 preferred_element_type=jnp.float32).astype(jnp.bfloat16)

    # conv1 propagate, slab-pipelined: wait on slab s just before its rows are consumed so the
    # bulk of the O(N^2) DMA hides behind the row-blocked A@(X W1) matmuls.
    for s in range(n_slabs):
        slab_copy(s).wait()
        h_s = jnp.dot(a_vmem[pl.ds(s * slab, slab), :], p1,
                      preferred_element_type=jnp.float32) + b1_ref[...]
        h_scratch[pl.ds(s * slab, slab), :] = jnp.maximum(h_s, 0.0).astype(jnp.bfloat16)

    a = a_vmem[...]
    h1 = h_scratch[...]

    # conv2: relu(A @ (H1 W2) + b2)
    p2 = jnp.dot(h1, w2_ref[...], preferred_element_type=jnp.float32).astype(jnp.bfloat16)
    h2 = jnp.dot(a, p2, preferred_element_type=jnp.float32) + b2_ref[...]
    h2 = jnp.maximum(h2, 0.0).astype(jnp.bfloat16)

    # fused mu|logstd head: one (H, 2*Cout) matmul + one A@(.) instead of two each
    p3 = jnp.dot(h2, wh_ref[...], preferred_element_type=jnp.float32).astype(jnp.bfloat16)
    out_ref[...] = (jnp.dot(a, p3, preferred_element_type=jnp.float32)
                    + bh_ref[...]).astype(out_ref.dtype)


# --------------------------------- wrapper ------------------------------------

def deep_variational_gcn_encoder(x, edge_index, params, edge_weight=None):
    """params: dict with w1,b1,w2,b2,wmu,bmu,wls,bls (biases shaped (1, dim))."""
    n, c_in = x.shape
    h_dim = params["w1"].shape[1]
    c_out = params["wmu"].shape[1]

    # Padded, lane-dense layout: every matmul dim (including N, which is A's lane dim and the
    # contraction dim of the propagate matmuls) goes to a multiple of 128.
    n_p = _round_up(n, 128)
    cin_p = _round_up(c_in, 128)
    h_p = _round_up(h_dim, 128)
    cho_p = _round_up(2 * c_out, 128)   # fused mu|logstd head width

    # Degree math in f32, then cast to bf16 *before* padding so no f32 padded N^2 copy exists.
    a_hat = build_norm_adj(edge_index, n, edge_weight)
    a_p = _pad2d(a_hat.astype(jnp.bfloat16), n_p, n_p)
    x_p = _pad2d(x, n_p, cin_p).astype(jnp.bfloat16)

    w1 = _pad2d(params["w1"], cin_p, h_p).astype(jnp.bfloat16)
    b1 = _pad2d(params["b1"], 1, h_p).astype(jnp.float32)
    w2 = _pad2d(params["w2"], h_p, h_p).astype(jnp.bfloat16)
    b2 = _pad2d(params["b2"], 1, h_p).astype(jnp.float32)
    w_head = _pad2d(jnp.concatenate([params["wmu"], params["wls"]], axis=1),
                    h_p, cho_p).astype(jnp.bfloat16)
    b_head = _pad2d(jnp.concatenate([params["bmu"], params["bls"]], axis=1),
                    1, cho_p).astype(jnp.float32)

    vmem_inputs = (x_p, w1, b1, w2, b2, w_head, b_head)

    def full_spec(arr):
        return pl.BlockSpec(arr.shape, lambda: (0,) * arr.ndim)

    in_specs = [pl.BlockSpec(memory_space=pl.ANY)] + [full_spec(a) for a in vmem_inputs]

    # Slab count for the pipelined A copy: at least 128 rows per slab, at most 8 slabs.
    n_slabs = max(1, min(8, n_p // 128))
    assert n_p % n_slabs == 0

    # VMEM budget: resident A + bf16 H scratch + single-buffered operands (gridless => no
    # pipelining) + bf16 output + f32 intermediate headroom; capped per generation.
    def nbytes(a):
        return int(a.size) * a.dtype.itemsize

    a_bytes = n_p * n_p * 2
    needed = (a_bytes
              + n_p * h_p * 2                              # h_scratch (bf16)
              + sum(nbytes(a) for a in vmem_inputs)        # operands, single-buffered
              + n_p * cho_p * 2                            # bf16 output buffer
              + 4 * n_p * max(h_p, cho_p) * 4)             # live f32 intermediates
    try:
        cap = int(pltpu.get_tpu_info().vmem_capacity_bytes) * 3 // 4   # ~96 MiB v5e/v6e, ~48 MiB v7x
    except Exception:
        cap = 48 << 20
    cap = max(cap, 32 << 20)
    vmem_limit = int(min(needed + (16 << 20), cap))

    flops = 2 * n_p * (cin_p * h_p + n_p * h_p
                       + h_p * h_p + n_p * h_p
                       + h_p * cho_p + n_p * cho_p)
    bytes_accessed = (a_bytes + sum(nbytes(a) for a in vmem_inputs) + n_p * cho_p * 2)

    out = pl.pallas_call(
        functools.partial(vgcn_encoder_kernel, n_slabs),
        out_shape=jax.ShapeDtypeStruct((n_p, cho_p), jnp.bfloat16),
        in_specs=in_specs,
        out_specs=pl.BlockSpec((n_p, cho_p), lambda: (0, 0)),
        scratch_shapes=[pltpu.VMEM((n_p, n_p), jnp.bfloat16),
                        pltpu.SemaphoreType.DMA((n_slabs,)),
                        pltpu.VMEM((n_p, h_p), jnp.bfloat16)],
        compiler_params=pltpu.CompilerParams(vmem_limit_bytes=vmem_limit),
        cost_estimate=pl.CostEstimate(flops=flops, transcendentals=0,
                                      bytes_accessed=bytes_accessed),
    )(a_p, *vmem_inputs)

    mu = out[:n, :c_out].astype(jnp.float32)
    logstd = out[:n, c_out:2 * c_out].astype(jnp.float32)
    return mu, logstd


# --------------------------- deterministic params -----------------------------

def glorot(key, shape):
    fan_in, fan_out = shape
    limit = jnp.sqrt(6.0 / (fan_in + fan_out))
    return jax.random.uniform(key, shape, jnp.float32, -limit, limit)


def init_params(key, in_channels, out_channels):
    # GCNConv: weight = glorot, bias = zeros (PyG default)
    k1, k2, k3, k4 = jax.random.split(key, 4)
    h = 2 * out_channels
    return {
        "w1": glorot(k1, (in_channels, h)),   "b1": jnp.zeros((1, h), jnp.float32),
        "w2": glorot(k2, (h, h)),             "b2": jnp.zeros((1, h), jnp.float32),
        "wmu": glorot(k3, (h, out_channels)), "bmu": jnp.zeros((1, out_channels), jnp.float32),
        "wls": glorot(k4, (h, out_channels)), "bls": jnp.zeros((1, out_channels), jnp.float32),
    }


# --------------------------------- reference ----------------------------------

def reference_forward(x, edge_index, params, edge_weight=None):
    a = build_norm_adj(edge_index, x.shape[0], edge_weight)
    h = jnp.maximum(a @ (x @ params["w1"]) + params["b1"], 0.0)
    h = jnp.maximum(a @ (h @ params["w2"]) + params["b2"], 0.0)
    mu = a @ (h @ params["wmu"]) + params["bmu"]
    ls = a @ (h @ params["wls"]) + params["bls"]
    return mu, ls


# ----------------------------------- main --------------------------------------

if __name__ == "__main__":
    key = jax.random.PRNGKey(0)
    k_param, k_x = jax.random.split(key)

    num_nodes = 16
    in_channels = 32
    out_channels = 16

    params = init_params(k_param, in_channels, out_channels)
    x = jax.random.normal(k_x, (num_nodes, in_channels), jnp.float32)

    # deterministic small graph: undirected ring (both directions listed)
    src = jnp.arange(num_nodes, dtype=jnp.int32)
    dst = (src + 1) % num_nodes
    edge_index = jnp.stack([jnp.concatenate([src, dst]),
                            jnp.concatenate([dst, src])], axis=0)

    mu, logstd = deep_variational_gcn_encoder(x, edge_index, params)
    mu = jax.block_until_ready(mu)
    logstd = jax.block_until_ready(logstd)

    mu_ref, logstd_ref = reference_forward(x, edge_index, params)
    # bf16 MXU operands / bf16 output (f32 accumulation) -> looser tolerance than pure-f32
    assert mu.shape == mu_ref.shape and logstd.shape == logstd_ref.shape
    assert jnp.allclose(mu, mu_ref, atol=5e-2, rtol=5e-2)
    assert jnp.allclose(logstd, logstd_ref, atol=5e-2, rtol=5e-2)

    print("KERNEL_OK")
</pallas_src>

<mosaic_0001>
module attributes {stable_mosaic.version = 11 : i64} {
  func.func @vgcn_encoder_kernel(%arg0: memref<128x128xbf16, #tpu.memory_space<any>>, %arg1: memref<128x128xbf16, #tpu.memory_space<vmem>>, %arg2: memref<128x128xbf16, #tpu.memory_space<vmem>>, %arg3: memref<1x128xf32, #tpu.memory_space<vmem>>, %arg4: memref<128x128xbf16, #tpu.memory_space<vmem>>, %arg5: memref<1x128xf32, #tpu.memory_space<vmem>>, %arg6: memref<128x128xbf16, #tpu.memory_space<vmem>>, %arg7: memref<1x128xf32, #tpu.memory_space<vmem>>, %arg8: memref<128x128xbf16, #tpu.memory_space<vmem>>, %arg9: memref<128x128xbf16, #tpu.memory_space<vmem>>, %arg10: memref<1x!tpu.dma_semaphore, #tpu.memory_space<semaphore_mem>>, %arg11: memref<128x128xbf16, #tpu.memory_space<vmem>>) attributes {dimension_semantics = [], scalar_prefetch = 0 : i64, scratch_operands = 3 : i64, tpu.core_type = #tpu.core_type<tc>} {
    %c0_i32 = arith.constant 0 : i32
    %c0_i32_0 = arith.constant 0 : i32
    %c0_i32_1 = arith.constant 0 : i32
    %0 = tpu.memref_slice %arg0[%c0_i32_0, %c0_i32_1] : memref<128x128xbf16, #tpu.memory_space<any>> -> memref<128x128xbf16, #tpu.memory_space<any>>
    %c0_i32_2 = arith.constant 0 : i32
    %c0_i32_3 = arith.constant 0 : i32
    %1 = tpu.memref_slice %arg9[%c0_i32_2, %c0_i32_3] : memref<128x128xbf16, #tpu.memory_space<vmem>> -> memref<128x128xbf16, #tpu.memory_space<vmem>>
    %2 = tpu.memref_slice %arg10[%c0_i32] : memref<1x!tpu.dma_semaphore, #tpu.memory_space<semaphore_mem>> -> memref<1x!tpu.dma_semaphore, #tpu.memory_space<semaphore_mem>>
    %3 = tpu.memref_squeeze %2 : memref<1x!tpu.dma_semaphore, #tpu.memory_space<semaphore_mem>> -> memref<!tpu.dma_semaphore, #tpu.memory_space<semaphore_mem>>
    tpu.enqueue_dma source(%0 : memref<128x128xbf16, #tpu.memory_space<any>>) target(%1 : memref<128x128xbf16, #tpu.memory_space<vmem>>) target_semaphore(%3 : memref<!tpu.dma_semaphore, #tpu.memory_space<semaphore_mem>>)
    %c0 = arith.constant 0 : index
    %c0_4 = arith.constant 0 : index
    %4 = vector.load %arg1[%c0, %c0_4] : memref<128x128xbf16, #tpu.memory_space<vmem>>, vector<128x128xbf16>
    %c0_5 = arith.constant 0 : index
    %c0_6 = arith.constant 0 : index
    %5 = vector.load %arg2[%c0_5, %c0_6] : memref<128x128xbf16, #tpu.memory_space<vmem>>, vector<128x128xbf16>
    %cst = arith.constant dense<0.000000e+00> : vector<128x128xf32>
    %6 = tpu.matmul %4, %5, %cst {dimension_numbers = #tpu.dot_dimension_numbers<[1], [0], [0], [1], [0, 0, 1, 1], [], []>} : vector<128x128xbf16>, vector<128x128xbf16>, vector<128x128xf32> -> vector<128x128xf32>
    %7 = arith.truncf %6 : vector<128x128xf32> to vector<128x128xbf16>
    %c0_i32_7 = arith.constant 0 : i32
    %c0_i32_8 = arith.constant 0 : i32
    %c0_i32_9 = arith.constant 0 : i32
    %8 = tpu.memref_slice %arg0[%c0_i32_8, %c0_i32_9] : memref<128x128xbf16, #tpu.memory_space<any>> -> memref<128x128xbf16, #tpu.memory_space<any>>
    %c0_i32_10 = arith.constant 0 : i32
    %c0_i32_11 = arith.constant 0 : i32
    %9 = tpu.memref_slice %arg9[%c0_i32_10, %c0_i32_11] : memref<128x128xbf16, #tpu.memory_space<vmem>> -> memref<128x128xbf16, #tpu.memory_space<vmem>>
    %10 = tpu.memref_slice %arg10[%c0_i32_7] : memref<1x!tpu.dma_semaphore, #tpu.memory_space<semaphore_mem>> -> memref<1x!tpu.dma_semaphore, #tpu.memory_space<semaphore_mem>>
    %11 = tpu.memref_squeeze %10 : memref<1x!tpu.dma_semaphore, #tpu.memory_space<semaphore_mem>> -> memref<!tpu.dma_semaphore, #tpu.memory_space<semaphore_mem>>
    tpu.wait_dma2 semaphore(%11 : memref<!tpu.dma_semaphore, #tpu.memory_space<semaphore_mem>>) src(%8 : memref<128x128xbf16, #tpu.memory_space<any>>) dst(%9 : memref<128x128xbf16, #tpu.memory_space<vmem>>)
    %c0_12 = arith.constant 0 : index
    %c0_13 = arith.constant 0 : index
    %12 = vector.load %arg9[%c0_12, %c0_13] : memref<128x128xbf16, #tpu.memory_space<vmem>>, vector<128x128xbf16>
    %cst_14 = arith.constant dense<0.000000e+00> : vector<128x128xf32>
    %13 = tpu.matmul %12, %7, %cst_14 {dimension_numbers = #tpu.dot_dimension_numbers<[1], [0], [0], [1], [0, 0, 1, 1], [], []>} : vector<128x128xbf16>, vector<128x128xbf16>, vector<128x128xf32> -> vector<128x128xf32>
    %c0_15 = arith.constant 0 : index
    %c0_16 = arith.constant 0 : index
    %14 = vector.load %arg3[%c0_15, %c0_16] : memref<1x128xf32, #tpu.memory_space<vmem>>, vector<1x128xf32>
    %15 = vector.broadcast %14 : vector<1x128xf32> to vector<128x128xf32>
    %16 = arith.addf %13, %15 : vector<128x128xf32>
    %cst_17 = arith.constant 0.000000e+00 : f32
    %17 = vector.broadcast %cst_17 : f32 to vector<128x128xf32>
    %18 = arith.maximumf %16, %17 : vector<128x128xf32>
    %19 = arith.truncf %18 : vector<128x128xf32> to vector<128x128xbf16>
    %c0_18 = arith.constant 0 : index
    %c0_19 = arith.constant 0 : index
    %20 = vector.load %arg11[%c0_18, %c0_19] : memref<128x128xbf16, #tpu.memory_space<vmem>>, vector<128x128xbf16>
    tpu.vector_store %arg11[%c0_18, %c0_19], %19 {strides = array<i32>} : memref<128x128xbf16, #tpu.memory_space<vmem>>, vector<128x128xbf16>,
    %c0_20 = arith.constant 0 : index
    %c0_21 = arith.constant 0 : index
    %21 = vector.load %arg9[%c0_20, %c0_21] : memref<128x128xbf16, #tpu.memory_space<vmem>>, vector<128x128xbf16>
    %c0_22 = arith.constant 0 : index
    %c0_23 = arith.constant 0 : index
    %22 = vector.load %arg11[%c0_22, %c0_23] : memref<128x128xbf16, #tpu.memory_space<vmem>>, vector<128x128xbf16>
    %c0_24 = arith.constant 0 : index
    %c0_25 = arith.constant 0 : index
    %23 = vector.load %arg4[%c0_24, %c0_25] : memref<128x128xbf16, #tpu.memory_space<vmem>>, vector<128x128xbf16>
    %cst_26 = arith.constant dense<0.000000e+00> : vector<128x128xf32>
    %24 = tpu.matmul %22, %23, %cst_26 {dimension_numbers = #tpu.dot_dimension_numbers<[1], [0], [0], [1], [0, 0, 1, 1], [], []>} : vector<128x128xbf16>, vector<128x128xbf16>, vector<128x128xf32> -> vector<128x128xf32>
    %25 = arith.truncf %24 : vector<128x128xf32> to vector<128x128xbf16>
    %cst_27 = arith.constant dense<0.000000e+00> : vector<128x128xf32>
    %26 = tpu.matmul %21, %25, %cst_27 {dimension_numbers = #tpu.dot_dimension_numbers<[1], [0], [0], [1], [0, 0, 1, 1], [], []>} : vector<128x128xbf16>, vector<128x128xbf16>, vector<128x128xf32> -> vector<128x128xf32>
    %c0_28 = arith.constant 0 : index
    %c0_29 = arith.constant 0 : index
    %27 = vector.load %arg5[%c0_28, %c0_29] : memref<1x128xf32, #tpu.memory_space<vmem>>, vector<1x128xf32>
    %28 = vector.broadcast %27 : vector<1x128xf32> to vector<128x128xf32>
    %29 = arith.addf %26, %28 : vector<128x128xf32>
    %cst_30 = arith.constant 0.000000e+00 : f32
    %30 = vector.broadcast %cst_30 : f32 to vector<128x128xf32>
    %31 = arith.maximumf %29, %30 : vector<128x128xf32>
    %32 = arith.truncf %31 : vector<128x128xf32> to vector<128x128xbf16>
    %c0_31 = arith.constant 0 : index
    %c0_32 = arith.constant 0 : index
    %33 = vector.load %arg6[%c0_31, %c0_32] : memref<128x128xbf16, #tpu.memory_space<vmem>>, vector<128x128xbf16>
    %cst_33 = arith.constant dense<0.000000e+00> : vector<128x128xf32>
    %34 = tpu.matmul %32, %33, %cst_33 {dimension_numbers = #tpu.dot_dimension_numbers<[1], [0], [0], [1], [0, 0, 1, 1], [], []>} : vector<128x128xbf16>, vector<128x128xbf16>, vector<128x128xf32> -> vector<128x128xf32>
    %35 = arith.truncf %34 : vector<128x128xf32> to vector<128x128xbf16>
    %cst_34 = arith.constant dense<0.000000e+00> : vector<128x128xf32>
    %36 = tpu.matmul %21, %35, %cst_34 {dimension_numbers = #tpu.dot_dimension_numbers<[1], [0], [0], [1], [0, 0, 1, 1], [], []>} : vector<128x128xbf16>, vector<128x128xbf16>, vector<128x128xf32> -> vector<128x128xf32>
    %c0_35 = arith.constant 0 : index
    %c0_36 = arith.constant 0 : index
    %37 = vector.load %arg7[%c0_35, %c0_36] : memref<1x128xf32, #tpu.memory_space<vmem>>, vector<1x128xf32>
    %38 = vector.broadcast %37 : vector<1x128xf32> to vector<128x128xf32>
    %39 = arith.addf %36, %38 : vector<128x128xf32>
    %40 = arith.truncf %39 : vector<128x128xf32> to vector<128x128xbf16>
    %c0_37 = arith.constant 0 : index
    %c0_38 = arith.constant 0 : index
    %41 = vector.load %arg8[%c0_37, %c0_38] : memref<128x128xbf16, #tpu.memory_space<vmem>>, vector<128x128xbf16>
    tpu.vector_store %arg8[%c0_37, %c0_38], %40 {strides = array<i32>} : memref<128x128xbf16, #tpu.memory_space<vmem>>, vector<128x128xbf16>,
    return
  }
}

</mosaic_0001>

<llo_original>
// kernel: tpu_custom_call.1
$region0: #{tpu_custom_call.1}
  #allocation0 [shape = 'u32[]', space=smem, size = 0x4, offset = 0x4, fixed_abs, tag = 'smem constant byte address 0x4 - core index']
  #allocation1 [shape = 'u32[144,128]{1,0:T(1,128)}', space=vmem, size = 0x12000, scoped, tag = 'internal scratch']
  #allocation2 [shape = 'bf16[128,128]{1,0:T(16,128)(2,1)}', space=vmem, size = 0x8000, scoped, tag = 'scratch operand']
  #allocation3 [shape = 's32[1]{0}', space=sflag, size = 0x4, scoped, tag = 'scratch operand']
  #allocation4 [shape = 'bf16[128,128]{1,0:T(16,128)(2,1)}', space=vmem, size = 0x8000, scoped, tag = 'scratch operand']
  #allocation14 [shape = 's32[]', space=sflag, size = 0x4, offset = 0, fixed_abs, tag = 'sflag constant byte address 0x0 - dummy sync flag']
  #allocation15 [shape = 's32[]', space=sflag, size = 0x4, offset = 0, fixed_abs, tag = 'sflag constant byte address 0x0 - dummy sync flag']
  #allocation16 [shape = 'u32[]', space=smem, size = 0x4, offset = 0x44, fixed_abs, tag = 'smem constant byte address 0x44 - assertion arg 0']
  #allocation17 [shape = 'u32[]', space=smem, size = 0x4, offset = 0x48, fixed_abs, tag = 'smem constant byte address 0x48 - assertion arg 1']
  %s0 = inlined_call_operand.hbm [shape: bf16[128,128], index: 0, kind: input, shape index: {}]
  %s1 = inlined_call_operand.hbm [shape: bf16[128,128], index: 1, kind: input, shape index: {}]
  %s2 = inlined_call_operand.hbm [shape: bf16[128,128], index: 2, kind: input, shape index: {}]
  %s3 = inlined_call_operand.vmem [shape: f32[1,128], index: 3, kind: input, shape index: {}]
  %s4 = inlined_call_operand.hbm [shape: bf16[128,128], index: 4, kind: input, shape index: {}]
  %s5 = inlined_call_operand.vmem [shape: f32[1,128], index: 5, kind: input, shape index: {}]
  %s6 = inlined_call_operand.hbm [shape: bf16[128,128], index: 6, kind: input, shape index: {}]
  %s7 = inlined_call_operand.vmem [shape: f32[1,128], index: 7, kind: input, shape index: {}]
  %s8 = inlined_call_operand.hbm [shape: bf16[128,128], index: 8, kind: output, shape index: {}]
  %s9 = sld [smem:[#allocation0]]
  $region58: #{tpu_custom_call.1} parent=0
    _
  %s11 = ssub.s32 1, %s9
  %s12 = scalar_select 0, %s11, %s9
  $region1: #{tpu_custom_call.1} parent=0
    #allocation5 [shape = 'u8[32768]{0}', space=vmem, size = 0x8000, scoped, tag = 'input window, operand 1, single buffered']
    #allocation6 [shape = 's32[1]{0}', space=sflag, size = 0x4, scoped, tag = 'scoped memory for tpu_custom_call.1']
    #allocation7 [shape = 's32[1]{0}', space=sflag, size = 0x4, scoped, tag = 'scoped memory for tpu_custom_call.1']
    #allocation8 [shape = 'u8[32768]{0}', space=vmem, size = 0x8000, scoped, tag = 'input window, operand 2, single buffered']
    #allocation9 [shape = 's32[1]{0}', space=sflag, size = 0x4, scoped, tag = 'scoped memory for tpu_custom_call.1']
    #allocation10 [shape = 'u8[32768]{0}', space=vmem, size = 0x8000, scoped, tag = 'input window, operand 4, single buffered']
    #allocation11 [shape = 'u8[32768]{0}', space=vmem, size = 0x8000, scoped, tag = 'input window, operand 6, single buffered']
    #allocation12 [shape = 's32[1]{0}', space=sflag, size = 0x4, scoped, tag = 'scoped memory for tpu_custom_call.1']
    #allocation13 [shape = 'u8[32768]{0}', space=vmem, size = 0x8000, scoped, tag = 'output window, operand 0, single buffered']
    %13 = vsyncpa [#allocation6], 0
    %14 = vsyncpa [#allocation9], 0
    %15 = vsyncpa [#allocation12], 0
    %16 = vsyncpa [#allocation7], 0
    // Predicated region
    $region2: #{tpu_custom_call.1} parent=1 // pred_check
      _
    $region3: #{tpu_custom_call.1} parent=1 // pred_check_branch
      %18 = sbr.rel (0) target = $region5
    $region4: #{tpu_custom_call.1} parent=1 // pred_region
      %s20 = ssub.s32 1024, 1024
      %21 = vsyncadd [#allocation6], %s20
      %s22 = sshll.u32 [#allocation5], 4
      %s23 = int_to_ptr.vmem [resolvable:$true] %s22
      %28 = dma.hbm_to_vmem [thread:$0]  %s1, 1024, %s23, [#allocation6], 64, 64, 4
    $region5: #{tpu_custom_call.1} parent=1 // pred_fallthru
      _
    // Predicated region
    $region6: #{tpu_custom_call.1} parent=1 // pred_check
      _
    $region7: #{tpu_custom_call.1} parent=1 // pred_check_branch
      %30 = sbr.rel (0) target = $region9
    $region8: #{tpu_custom_call.1} parent=1 // pred_region
      %s32 = ssub.s32 1024, 1024
      %33 = vsyncadd [#allocation9], %s32
      %s34 = sshll.u32 [#allocation8], 4
      %s35 = int_to_ptr.vmem [resolvable:$true] %s34
      %40 = dma.hbm_to_vmem [thread:$0]  %s2, 1024, %s35, [#allocation9], 64, 64, 4
    $region9: #{tpu_custom_call.1} parent=1 // pred_fallthru
      _
    // Predicated region
    $region10: #{tpu_custom_call.1} parent=1 // pred_check
      _
    $region11: #{tpu_custom_call.1} parent=1 // pred_check_branch
      %42 = sbr.rel (0) target = $region13
    $region12: #{tpu_custom_call.1} parent=1 // pred_region
      _
    $region13: #{tpu_custom_call.1} parent=1 // pred_fallthru
      _
    // Predicated region
    $region14: #{tpu_custom_call.1} parent=1 // pred_check
      _
    $region15: #{tpu_custom_call.1} parent=1 // pred_check_branch
      %44 = sbr.rel (0) target = $region17
    $region16: #{tpu_custom_call.1} parent=1 // pred_region
      %s46 = ssub.s32 1024, 1024
      %47 = vsyncadd [#allocation9], %s46
      %s48 = sshll.u32 [#allocation10], 4
      %s49 = int_to_ptr.vmem [resolvable:$true] %s48
      %54 = dma.hbm_to_vmem [thread:$0]  %s4, 1024, %s49, [#allocation9], 64, 64, 4
    $region17: #{tpu_custom_call.1} parent=1 // pred_fallthru
      _
    // Predicated region
    $region18: #{tpu_custom_call.1} parent=1 // pred_check
      _
    $region19: #{tpu_custom_call.1} parent=1 // pred_check_branch
      %56 = sbr.rel (0) target = $region21
    $region20: #{tpu_custom_call.1} parent=1 // pred_region
      _
    $region21: #{tpu_custom_call.1} parent=1 // pred_fallthru
      _
    // Predicated region
    $region22: #{tpu_custom_call.1} parent=1 // pred_check
      _
    $region23: #{tpu_custom_call.1} parent=1 // pred_check_branch
      %58 = sbr.rel (0) target = $region25
    $region24: #{tpu_custom_call.1} parent=1 // pred_region
      %s60 = ssub.s32 1024, 1024
      %61 = vsyncadd [#allocation12], %s60
      %s62 = sshll.u32 [#allocation11], 4
      %s63 = int_to_ptr.vmem [resolvable:$true] %s62
      %68 = dma.hbm_to_vmem [thread:$0]  %s6, 1024, %s63, [#allocation12], 64, 64, 4
    $region25: #{tpu_custom_call.1} parent=1 // pred_fallthru
      _
    // Predicated region
    $region26: #{tpu_custom_call.1} parent=1 // pred_check
      _
    $region27: #{tpu_custom_call.1} parent=1 // pred_check_branch
      %70 = sbr.rel (0) target = $region29
    $region28: #{tpu_custom_call.1} parent=1 // pred_region
      _
    $region29: #{tpu_custom_call.1} parent=1 // pred_fallthru
      _
    // Predicated region
    $region30: #{tpu_custom_call.1} parent=1 // pred_check
      _
    $region31: #{tpu_custom_call.1} parent=1 // pred_check_branch
      %72 = sbr.rel (0) target = $region33
    $region32: #{tpu_custom_call.1} parent=1 // pred_region
      %73 = dma.done [#allocation6], 1024
    $region33: #{tpu_custom_call.1} parent=1 // pred_fallthru
      _
    // Predicated region
    $region34: #{tpu_custom_call.1} parent=1 // pred_check
      _
    $region35: #{tpu_custom_call.1} parent=1 // pred_check_branch
      %75 = sbr.rel (0) target = $region37
    $region36: #{tpu_custom_call.1} parent=1 // pred_region
      %76 = dma.done [#allocation9], 1024
    $region37: #{tpu_custom_call.1} parent=1 // pred_fallthru
      _
    // Predicated region
    $region38: #{tpu_custom_call.1} parent=1 // pred_check
      _
    $region39: #{tpu_custom_call.1} parent=1 // pred_check_branch
      %78 = sbr.rel (0) target = $region41
    $region40: #{tpu_custom_call.1} parent=1 // pred_region
      %79 = dma.done [#allocation9], 1024
    $region41: #{tpu_custom_call.1} parent=1 // pred_fallthru
      _
    // Predicated region
    $region42: #{tpu_custom_call.1} parent=1 // pred_check
      _
    $region43: #{tpu_custom_call.1} parent=1 // pred_check_branch
      %81 = sbr.rel (0) target = $region45
    $region44: #{tpu_custom_call.1} parent=1 // pred_region
      %82 = dma.done [#allocation12], 1024
    $region45: #{tpu_custom_call.1} parent=1 // pred_fallthru
      _
    // Predicated region
    $region46: #{tpu_custom_call.1} parent=1 // pred_check
      _
    $region47: #{tpu_custom_call.1} parent=1 // pred_check_branch
      %85 = sbr.rel target = $region49
    $region48: #{tpu_custom_call.1} parent=1 // pred_region
      %86 = sst [smem:[#allocation16]] [#allocation15]
      %87 = sst [smem:[#allocation17]] [#allocation14]
    $region49: #{tpu_custom_call.1} parent=1 // pred_fallthru
      _
    %89 = shalt.err (0)
    %s91 = sshll.u32 [#allocation2], 4
    %s92 = int_to_ptr.vmem [resolvable:$true] %s91
    %94 = dma.hbm_to_vmem [thread:$0]  %s0, 1024, %s92, [#allocation3]
    %v95 = vld [vmem:[#allocation5] sm:$0xf]
    %v96 = vld [vmem:[#allocation5 + $0x4] sm:$0xf]
    %v97 = vld [vmem:[#allocation5 + $0x8] sm:$0xf]
    %v98 = vld [vmem:[#allocation5 + $0xc] sm:$0xf]
    %v99 = vld [vmem:[#allocation5 + $0x10] sm:$0xf]
    %v100 = vld [vmem:[#allocation5 + $0x14] sm:$0xf]
    %v101 = vld [vmem:[#allocation5 + $0x18] sm:$0xf]
    %v102 = vld [vmem:[#allocation5 + $0x1c] sm:$0xf]
    %v103 = vld [vmem:[#allocation5 + $0x20] sm:$0xf]
    %v104 = vld [vmem:[#allocation5 + $0x24] sm:$0xf]
    %v105 = vld [vmem:[#allocation5 + $0x28] sm:$0xf]
    %v106 = vld [vmem:[#allocation5 + $0x2c] sm:$0xf]
    %v107 = vld [vmem:[#allocation5 + $0x30] sm:$0xf]
    %v108 = vld [vmem:[#allocation5 + $0x34] sm:$0xf]
    %v109 = vld [vmem:[#allocation5 + $0x38] sm:$0xf]
    %v110 = vld [vmem:[#allocation5 + $0x3c] sm:$0xf]
    %v111 = vld [vmem:[#allocation8] sm:$0xf]
    %v112 = vld [vmem:[#allocation8 + $0x4] sm:$0xf]
    %v113 = vld [vmem:[#allocation8 + $0x8] sm:$0xf]
    %v114 = vld [vmem:[#allocation8 + $0xc] sm:$0xf]
    %v115 = vld [vmem:[#allocation8 + $0x10] sm:$0xf]
    %v116 = vld [vmem:[#allocation8 + $0x14] sm:$0xf]
    %v117 = vld [vmem:[#allocation8 + $0x18] sm:$0xf]
    %v118 = vld [vmem:[#allocation8 + $0x1c] sm:$0xf]
    %v119 = vld [vmem:[#allocation8 + $0x20] sm:$0xf]
    %v120 = vld [vmem:[#allocation8 + $0x24] sm:$0xf]
    %v121 = vld [vmem:[#allocation8 + $0x28] sm:$0xf]
    %v122 = vld [vmem:[#allocation8 + $0x2c] sm:$0xf]
    %v123 = vld [vmem:[#allocation8 + $0x30] sm:$0xf]
    %v124 = vld [vmem:[#allocation8 + $0x34] sm:$0xf]
    %v125 = vld [vmem:[#allocation8 + $0x38] sm:$0xf]
    %v126 = vld [vmem:[#allocation8 + $0x3c] sm:$0xf]
    %v143 = vunpack.c.l.b16 %v95
    %v144 = vunpack.c.l.b16 %v96
    %v145 = vunpack.c.l.b16 %v97
    %v146 = vunpack.c.l.b16 %v98
    %v147 = vunpack.c.l.b16 %v99
    %v148 = vunpack.c.l.b16 %v100
    %v149 = vunpack.c.l.b16 %v101
    %v150 = vunpack.c.l.b16 %v102
    %v151 = vunpack.c.l.b16 %v103
    %v152 = vunpack.c.l.b16 %v104
    %v153 = vunpack.c.l.b16 %v105
    %v154 = vunpack.c.l.b16 %v106
    %v155 = vunpack.c.l.b16 %v107
    %v156 = vunpack.c.l.b16 %v108
    %v157 = vunpack.c.l.b16 %v109
    %v158 = vunpack.c.l.b16 %v110
    %v159 = vpack.c.b16 %v144, %v143
    %v160 = vpack.c.b16 %v146, %v145
    %v161 = vpack.c.b16 %v148, %v147
    %v162 = vpack.c.b16 %v150, %v149
    %v163 = vpack.c.b16 %v152, %v151
    %v164 = vpack.c.b16 %v154, %v153
    %v165 = vpack.c.b16 %v156, %v155
    %v166 = vpack.c.b16 %v158, %v157
    %v191 = vunpack.c.l.b16 %v111
    %v192 = vunpack.c.l.b16 %v112
    %v193 = vunpack.c.l.b16 %v113
    %v194 = vunpack.c.l.b16 %v114
    %v195 = vunpack.c.l.b16 %v115
    %v196 = vunpack.c.l.b16 %v116
    %v197 = vunpack.c.l.b16 %v117
    %v198 = vunpack.c.l.b16 %v118
    %v199 = vunpack.c.l.b16 %v119
    %v200 = vunpack.c.l.b16 %v120
    %v201 = vunpack.c.l.b16 %v121
    %v202 = vunpack.c.l.b16 %v122
    %v203 = vunpack.c.l.b16 %v123
    %v204 = vunpack.c.l.b16 %v124
    %v205 = vunpack.c.l.b16 %v125
    %v206 = vunpack.c.l.b16 %v126
    %v207 = vpack.c.b16 %v192, %v191
    %v208 = vpack.c.b16 %v194, %v193
    %v209 = vpack.c.b16 %v196, %v195
    %v210 = vpack.c.b16 %v198, %v197
    %v211 = vpack.c.b16 %v200, %v199
    %v212 = vpack.c.b16 %v202, %v201
    %v213 = vpack.c.b16 %v204, %v203
    %v214 = vpack.c.b16 %v206, %v205
    %223 = vmatprep.subr.bf16.mxu0 0
    %224 = vmatpush1.bf16.msra.mxu0 %v207
    %225 = vmatprep.subr.bf16.mxu0 0
    %226 = vmatpush1.bf16.msra.mxu0 %v208
    %227 = vmatprep.subr.bf16.mxu0 0
    %228 = vmatpush1.bf16.msra.mxu0 %v209
    %229 = vmatprep.subr.bf16.mxu0 0
    %230 = vmatpush1.bf16.msra.mxu0 %v210
    %231 = vmatprep.subr.bf16.mxu0 0
    %232 = vmatpush1.bf16.msra.mxu0 %v211
    %233 = vmatprep.subr.bf16.mxu0 0
    %234 = vmatpush1.bf16.msra.mxu0 %v212
    %235 = vmatprep.subr.bf16.mxu0 0
    %236 = vmatpush1.bf16.msra.mxu0 %v213
    %237 = vmatprep.subr.bf16.mxu0 0
    %238 = vmatpush1.bf16.msra.mxu0 %v214
    %239 = vmatprep.subr.bf16.mxu0 0
    %240 = vmatpush1.bf16.msra.mxu0 0
    %241 = vmatprep.subr.bf16.mxu0 0
    %242 = vmatpush1.bf16.msra.mxu0 0
    %243 = vmatprep.subr.bf16.mxu0 0
    %244 = vmatpush1.bf16.msra.mxu0 0
    %245 = vmatprep.subr.bf16.mxu0 0
    %246 = vmatpush1.bf16.msra.mxu0 0
    %247 = vmatprep.subr.bf16.mxu0 0
    %248 = vmatpush1.bf16.msra.mxu0 0
    %249 = vmatprep.subr.bf16.mxu0 0
    %250 = vmatpush1.bf16.msra.mxu0 0
    %251 = vmatprep.subr.bf16.mxu0 0
    %252 = vmatpush1.bf16.msra.mxu0 0
    %253 = vmatprep.subr.bf16.mxu0 0
    %254 = vmatpush1.bf16.msra.mxu0 0
    %255 = vmatprep.mubr.bf16.mxu0 0
    %256 = vmatmul.mubr.bf16.gmra.mrb[0].mxu0 %v159
    %v257 = vpop.f32.mrb[0].mxu0
    %v258 = vadd.f32 0.0, %v257
    %v259 = vpop.f32.mrb[0].mxu0
    %v260 = vpop.f32.mrb[0].mxu0
    %v261 = vadd.f32 0.0, %v260
    %v262 = vpop.f32.mrb[0].mxu0
    %263 = vmatprep.mubr.bf16.mxu0 0
    %264 = vmatmul.mubr.bf16.gmra.mrb[0].mxu0 %v160
    %v265 = vpop.f32.mrb[0].mxu0
    %v266 = vadd.f32 0.0, %v265
    %v267 = vpop.f32.mrb[0].mxu0
    %v268 = vpop.f32.mrb[0].mxu0
    %v269 = vadd.f32 0.0, %v268
    %v270 = vpop.f32.mrb[0].mxu0
    %271 = vmatprep.mubr.bf16.mxu0 0
    %272 = vmatmul.mubr.bf16.gmra.mrb[0].mxu0 %v161
    %v273 = vpop.f32.mrb[0].mxu0
    %v274 = vadd.f32 0.0, %v273
    %v275 = vpop.f32.mrb[0].mxu0
    %v276 = vpop.f32.mrb[0].mxu0
    %v277 = vadd.f32 0.0, %v276
    %v278 = vpop.f32.mrb[0].mxu0
    %279 = vmatprep.mubr.bf16.mxu0 0
    %280 = vmatmul.mubr.bf16.gmra.mrb[0].mxu0 %v162
    %v281 = vpop.f32.mrb[0].mxu0
    %v282 = vadd.f32 0.0, %v281
    %v283 = vpop.f32.mrb[0].mxu0
    %v284 = vpop.f32.mrb[0].mxu0
    %v285 = vadd.f32 0.0, %v284
    %v286 = vpop.f32.mrb[0].mxu0
    %287 = vmatprep.mubr.bf16.mxu0 0
    %288 = vmatmul.mubr.bf16.gmra.mrb[0].mxu0 %v163
    %v289 = vpop.f32.mrb[0].mxu0
    %v290 = vadd.f32 0.0, %v289
    %v291 = vpop.f32.mrb[0].mxu0
    %v292 = vpop.f32.mrb[0].mxu0
    %v293 = vadd.f32 0.0, %v292
    %v294 = vpop.f32.mrb[0].mxu0
    %295 = vmatprep.mubr.bf16.mxu0 0
    %296 = vmatmul.mubr.bf16.gmra.mrb[0].mxu0 %v164
    %v297 = vpop.f32.mrb[0].mxu0
    %v298 = vadd.f32 0.0, %v297
    %v299 = vpop.f32.mrb[0].mxu0
    %v300 = vpop.f32.mrb[0].mxu0
    %v301 = vadd.f32 0.0, %v300
    %v302 = vpop.f32.mrb[0].mxu0
    %303 = vmatprep.mubr.bf16.mxu0 0
    %304 = vmatmul.mubr.bf16.gmra.mrb[0].mxu0 %v165
    %v305 = vpop.f32.mrb[0].mxu0
    %v306 = vadd.f32 0.0, %v305
    %v307 = vpop.f32.mrb[0].mxu0
    %v308 = vpop.f32.mrb[0].mxu0
    %v309 = vadd.f32 0.0, %v308
    %v310 = vpop.f32.mrb[0].mxu0
    %311 = vmatprep.mubr.bf16.mxu0 0
    %312 = vmatmul.mubr.bf16.gmra.mrb[0].mxu0 %v166
    %v313 = vpop.f32.mrb[0].mxu0
    %v314 = vadd.f32 0.0, %v313
    %v315 = vpop.f32.mrb[0].mxu0
    %v316 = vpop.f32.mrb[0].mxu0
    %v317 = vadd.f32 0.0, %v316
    %v318 = vpop.f32.mrb[0].mxu0
    %319 = vdwg.mxu0
    %v320 = vpack.c.bf16 %v261, %v258
    %v321 = vpack.c.bf16 %v269, %v266
    %v322 = vpack.c.bf16 %v277, %v274
    %v323 = vpack.c.bf16 %v285, %v282
    %v324 = vpack.c.bf16 %v293, %v290
    %v325 = vpack.c.bf16 %v301, %v298
    %v326 = vpack.c.bf16 %v309, %v306
    %v327 = vpack.c.bf16 %v317, %v314
    %s328 = smul.u32 4, 16
    %s329 = smul.u32 %s328, 1
    %s330 = sshll.u32 %s329, 4
    %331 = dma.done [#allocation3], %s330
    %v332 = vld [vmem:[#allocation2] sm:$0xff]
    %v333 = vld [vmem:[#allocation2 + $0x8] sm:$0xff]
    %v334 = vld [vmem:[#allocation2 + $0x10] sm:$0xff]
    %v335 = vld [vmem:[#allocation2 + $0x18] sm:$0xff]
    %v336 = vld [vmem:[#allocation2 + $0x20] sm:$0xff]
    %v337 = vld [vmem:[#allocation2 + $0x28] sm:$0xff]
    %v338 = vld [vmem:[#allocation2 + $0x30] sm:$0xff]
    %v339 = vld [vmem:[#allocation2 + $0x38] sm:$0xff]
    %v340 = vld [vmem:[%s3] sm:$0x1]
    %v342 = vlaneseq
    %v343 = vshrl.u32 %v342, 7
    %v344 = vsub.s32 0, %v343
    %v345 = vrot.slane %v340, %v344
    %347 = vmatprep.subr.bf16.mxu0 0
    %348 = vmatpush1.bf16.msra.mxu0 %v320
    %349 = vmatprep.subr.bf16.mxu0 0
    %350 = vmatpush1.bf16.msra.mxu0 %v321
    %351 = vmatprep.subr.bf16.mxu0 0
    %352 = vmatpush1.bf16.msra.mxu0 %v322
    %353 = vmatprep.subr.bf16.mxu0 0
    %354 = vmatpush1.bf16.msra.mxu0 %v323
    %355 = vmatprep.subr.bf16.mxu0 0
    %356 = vmatpush1.bf16.msra.mxu0 %v324
    %357 = vmatprep.subr.bf16.mxu0 0
    %358 = vmatpush1.bf16.msra.mxu0 %v325
    %359 = vmatprep.subr.bf16.mxu0 0
    %360 = vmatpush1.bf16.msra.mxu0 %v326
    %361 = vmatprep.subr.bf16.mxu0 0
    %362 = vmatpush1.bf16.msra.mxu0 %v327
    %363 = vmatprep.subr.bf16.mxu0 0
    %364 = vmatpush1.bf16.msra.mxu0 0
    %365 = vmatprep.subr.bf16.mxu0 0
    %366 = vmatpush1.bf16.msra.mxu0 0
    %367 = vmatprep.subr.bf16.mxu0 0
    %368 = vmatpush1.bf16.msra.mxu0 0
    %369 = vmatprep.subr.bf16.mxu0 0
    %370 = vmatpush1.bf16.msra.mxu0 0
    %371 = vmatprep.subr.bf16.mxu0 0
    %372 = vmatpush1.bf16.msra.mxu0 0
    %373 = vmatprep.subr.bf16.mxu0 0
    %374 = vmatpush1.bf16.msra.mxu0 0
    %375 = vmatprep.subr.bf16.mxu0 0
    %376 = vmatpush1.bf16.msra.mxu0 0
    %377 = vmatprep.subr.bf16.mxu0 0
    %378 = vmatpush1.bf16.msra.mxu0 0
    %379 = vmatprep.mubr.bf16.mxu0 0
    %380 = vmatmul.mubr.bf16.gmra.mrb[0].mxu0 %v332
    %v381 = vpop.f32.mrb[0].mxu0
    %v382 = vadd.f32 %v345, %v381
    %v383 = vpop.f32.mrb[0].mxu0
    %v384 = vpop.f32.mrb[0].mxu0
    %v385 = vadd.f32 %v345, %v384
    %v386 = vpop.f32.mrb[0].mxu0
    %387 = vmatprep.mubr.bf16.mxu0 0
    %388 = vmatmul.mubr.bf16.gmra.mrb[0].mxu0 %v333
    %v389 = vpop.f32.mrb[0].mxu0
    %v390 = vadd.f32 %v345, %v389
    %v391 = vpop.f32.mrb[0].mxu0
    %v392 = vpop.f32.mrb[0].mxu0
    %v393 = vadd.f32 %v345, %v392
    %v394 = vpop.f32.mrb[0].mxu0
    %395 = vmatprep.mubr.bf16.mxu0 0
    %396 = vmatmul.mubr.bf16.gmra.mrb[0].mxu0 %v334
    %v397 = vpop.f32.mrb[0].mxu0
    %v398 = vadd.f32 %v345, %v397
    %v399 = vpop.f32.mrb[0].mxu0
    %v400 = vpop.f32.mrb[0].mxu0
    %v401 = vadd.f32 %v345, %v400
    %v402 = vpop.f32.mrb[0].mxu0
    %403 = vmatprep.mubr.bf16.mxu0 0
    %404 = vmatmul.mubr.bf16.gmra.mrb[0].mxu0 %v335
    %v405 = vpop.f32.mrb[0].mxu0
    %v406 = vadd.f32 %v345, %v405
    %v407 = vpop.f32.mrb[0].mxu0
    %v408 = vpop.f32.mrb[0].mxu0
    %v409 = vadd.f32 %v345, %v408
    %v410 = vpop.f32.mrb[0].mxu0
    %411 = vmatprep.mubr.bf16.mxu0 0
    %412 = vmatmul.mubr.bf16.gmra.mrb[0].mxu0 %v336
    %v413 = vpop.f32.mrb[0].mxu0
    %v414 = vadd.f32 %v345, %v413
    %v415 = vpop.f32.mrb[0].mxu0
    %v416 = vpop.f32.mrb[0].mxu0
    %v417 = vadd.f32 %v345, %v416
    %v418 = vpop.f32.mrb[0].mxu0
    %419 = vmatprep.mubr.bf16.mxu0 0
    %420 = vmatmul.mubr.bf16.gmra.mrb[0].mxu0 %v337
    %v421 = vpop.f32.mrb[0].mxu0
    %v422 = vadd.f32 %v345, %v421
    %v423 = vpop.f32.mrb[0].mxu0
    %v424 = vpop.f32.mrb[0].mxu0
    %v425 = vadd.f32 %v345, %v424
    %v426 = vpop.f32.mrb[0].mxu0
    %427 = vmatprep.mubr.bf16.mxu0 0
    %428 = vmatmul.mubr.bf16.gmra.mrb[0].mxu0 %v338
    %v429 = vpop.f32.mrb[0].mxu0
    %v430 = vadd.f32 %v345, %v429
    %v431 = vpop.f32.mrb[0].mxu0
    %v432 = vpop.f32.mrb[0].mxu0
    %v433 = vadd.f32 %v345, %v432
    %v434 = vpop.f32.mrb[0].mxu0
    %435 = vmatprep.mubr.bf16.mxu0 0
    %436 = vmatmul.mubr.bf16.gmra.mrb[0].mxu0 %v339
    %v437 = vpop.f32.mrb[0].mxu0
    %v438 = vadd.f32 %v345, %v437
    %v439 = vpop.f32.mrb[0].mxu0
    %v440 = vpop.f32.mrb[0].mxu0
    %v441 = vadd.f32 %v345, %v440
    %v442 = vpop.f32.mrb[0].mxu0
    %443 = vdwg.mxu0
    %v444 = vmax.f32 %v382, 0.0
    %v445 = vmax.f32 %v385, 0.0
    %v446 = vmax.f32 %v390, 0.0
    %v447 = vmax.f32 %v393, 0.0
    %v448 = vmax.f32 %v398, 0.0
    %v449 = vmax.f32 %v401, 0.0
    %v450 = vmax.f32 %v406, 0.0
    %v451 = vmax.f32 %v409, 0.0
    %v452 = vmax.f32 %v414, 0.0
    %v453 = vmax.f32 %v417, 0.0
    %v454 = vmax.f32 %v422, 0.0
    %v455 = vmax.f32 %v425, 0.0
    %v456 = vmax.f32 %v430, 0.0
    %v457 = vmax.f32 %v433, 0.0
    %v458 = vmax.f32 %v438, 0.0
    %v459 = vmax.f32 %v441, 0.0
    %v460 = vpack.c.bf16 %v445, %v444
    %v461 = vpack.c.bf16 %v447, %v446
    %v462 = vpack.c.bf16 %v449, %v448
    %v463 = vpack.c.bf16 %v451, %v450
    %v464 = vpack.c.bf16 %v453, %v452
    %v465 = vpack.c.bf16 %v455, %v454
    %v466 = vpack.c.bf16 %v457, %v456
    %v467 = vpack.c.bf16 %v459, %v458
    %468 = vst [vmem:[#allocation4] sm:$0xff] %v460
    %469 = vst [vmem:[#allocation4 + $0x8] sm:$0xff] %v461
    %470 = vst [vmem:[#allocation4 + $0x10] sm:$0xff] %v462
    %471 = vst [vmem:[#allocation4 + $0x18] sm:$0xff] %v463
    %472 = vst [vmem:[#allocation4 + $0x20] sm:$0xff] %v464
    %473 = vst [vmem:[#allocation4 + $0x28] sm:$0xff] %v465
    %474 = vst [vmem:[#allocation4 + $0x30] sm:$0xff] %v466
    %475 = vst [vmem:[#allocation4 + $0x38] sm:$0xff] %v467
    %v476 = vld [vmem:[#allocation2] sm:$0xff]
    %v477 = vld [vmem:[#allocation2 + $0x8] sm:$0xff]
    %v478 = vld [vmem:[#allocation2 + $0x10] sm:$0xff]
    %v479 = vld [vmem:[#allocation2 + $0x18] sm:$0xff]
    %v480 = vld [vmem:[#allocation2 + $0x20] sm:$0xff]
    %v481 = vld [vmem:[#allocation2 + $0x28] sm:$0xff]
    %v482 = vld [vmem:[#allocation2 + $0x30] sm:$0xff]
    %v483 = vld [vmem:[#allocation2 + $0x38] sm:$0xff]
    %v484 = vld [vmem:[#allocation4] sm:$0xff]
    %v485 = vld [vmem:[#allocation4 + $0x8] sm:$0xff]
    %v486 = vld [vmem:[#allocation4 + $0x10] sm:$0xff]
    %v487 = vld [vmem:[#allocation4 + $0x18] sm:$0xff]
    %v488 = vld [vmem:[#allocation4 + $0x20] sm:$0xff]
    %v489 = vld [vmem:[#allocation4 + $0x28] sm:$0xff]
    %v490 = vld [vmem:[#allocation4 + $0x30] sm:$0xff]
    %v491 = vld [vmem:[#allocation4 + $0x38] sm:$0xff]
    %v492 = vld [vmem:[#allocation10] sm:$0xf]
    %v493 = vld [vmem:[#allocation10 + $0x4] sm:$0xf]
    %v494 = vld [vmem:[#allocation10 + $0x8] sm:$0xf]
    %v495 = vld [vmem:[#allocation10 + $0xc] sm:$0xf]
    %v496 = vld [vmem:[#allocation10 + $0x10] sm:$0xf]
    %v497 = vld [vmem:[#allocation10 + $0x14] sm:$0xf]
    %v498 = vld [vmem:[#allocation10 + $0x18] sm:$0xf]
    %v499 = vld [vmem:[#allocation10 + $0x1c] sm:$0xf]
    %v500 = vld [vmem:[#allocation10 + $0x20] sm:$0xf]
    %v501 = vld [vmem:[#allocation10 + $0x24] sm:$0xf]
    %v502 = vld [vmem:[#allocation10 + $0x28] sm:$0xf]
    %v503 = vld [vmem:[#allocation10 + $0x2c] sm:$0xf]
    %v504 = vld [vmem:[#allocation10 + $0x30] sm:$0xf]
    %v505 = vld [vmem:[#allocation10 + $0x34] sm:$0xf]
    %v506 = vld [vmem:[#allocation10 + $0x38] sm:$0xf]
    %v507 = vld [vmem:[#allocation10 + $0x3c] sm:$0xf]
    %v524 = vunpack.c.l.b16 %v492
    %v525 = vunpack.c.l.b16 %v493
    %v526 = vunpack.c.l.b16 %v494
    %v527 = vunpack.c.l.b16 %v495
    %v528 = vunpack.c.l.b16 %v496
    %v529 = vunpack.c.l.b16 %v497
    %v530 = vunpack.c.l.b16 %v498
    %v531 = vunpack.c.l.b16 %v499
    %v532 = vunpack.c.l.b16 %v500
    %v533 = vunpack.c.l.b16 %v501
    %v534 = vunpack.c.l.b16 %v502
    %v535 = vunpack.c.l.b16 %v503
    %v536 = vunpack.c.l.b16 %v504
    %v537 = vunpack.c.l.b16 %v505
    %v538 = vunpack.c.l.b16 %v506
    %v539 = vunpack.c.l.b16 %v507
    %v540 = vpack.c.b16 %v525, %v524
    %v541 = vpack.c.b16 %v527, %v526
    %v542 = vpack.c.b16 %v529, %v528
    %v543 = vpack.c.b16 %v531, %v530
    %v544 = vpack.c.b16 %v533, %v532
    %v545 = vpack.c.b16 %v535, %v534
    %v546 = vpack.c.b16 %v537, %v536
    %v547 = vpack.c.b16 %v539, %v538
    %556 = vmatprep.subr.bf16.mxu0 0
    %557 = vmatpush1.bf16.msra.mxu0 %v540
    %558 = vmatprep.subr.bf16.mxu0 0
    %559 = vmatpush1.bf16.msra.mxu0 %v541
    %560 = vmatprep.subr.bf16.mxu0 0
    %561 = vmatpush1.bf16.msra.mxu0 %v542
    %562 = vmatprep.subr.bf16.mxu0 0
    %563 = vmatpush1.bf16.msra.mxu0 %v543
    %564 = vmatprep.subr.bf16.mxu0 0
    %565 = vmatpush1.bf16.msra.mxu0 %v544
    %566 = vmatprep.subr.bf16.mxu0 0
    %567 = vmatpush1.bf16.msra.mxu0 %v545
    %568 = vmatprep.subr.bf16.mxu0 0
    %569 = vmatpush1.bf16.msra.mxu0 %v546
    %570 = vmatprep.subr.bf16.mxu0 0
    %571 = vmatpush1.bf16.msra.mxu0 %v547
    %572 = vmatprep.subr.bf16.mxu0 0
    %573 = vmatpush1.bf16.msra.mxu0 0
    %574 = vmatprep.subr.bf16.mxu0 0
    %575 = vmatpush1.bf16.msra.mxu0 0
    %576 = vmatprep.subr.bf16.mxu0 0
    %577 = vmatpush1.bf16.msra.mxu0 0
    %578 = vmatprep.subr.bf16.mxu0 0
    %579 = vmatpush1.bf16.msra.mxu0 0
    %580 = vmatprep.subr.bf16.mxu0 0
    %581 = vmatpush1.bf16.msra.mxu0 0
    %582 = vmatprep.subr.bf16.mxu0 0
    %583 = vmatpush1.bf16.msra.mxu0 0
    %584 = vmatprep.subr.bf16.mxu0 0
    %585 = vmatpush1.bf16.msra.mxu0 0
    %586 = vmatprep.subr.bf16.mxu0 0
    %587 = vmatpush1.bf16.msra.mxu0 0
    %588 = vmatprep.mubr.bf16.mxu0 0
    %589 = vmatmul.mubr.bf16.gmra.mrb[0].mxu0 %v484
    %v590 = vpop.f32.mrb[0].mxu0
    %v591 = vadd.f32 0.0, %v590
    %v592 = vpop.f32.mrb[0].mxu0
    %v593 = vpop.f32.mrb[0].mxu0
    %v594 = vadd.f32 0.0, %v593
    %v595 = vpop.f32.mrb[0].mxu0
    %596 = vmatprep.mubr.bf16.mxu0 0
    %597 = vmatmul.mubr.bf16.gmra.mrb[0].mxu0 %v485
    %v598 = vpop.f32.mrb[0].mxu0
    %v599 = vadd.f32 0.0, %v598
    %v600 = vpop.f32.mrb[0].mxu0
    %v601 = vpop.f32.mrb[0].mxu0
    %v602 = vadd.f32 0.0, %v601
    %v603 = vpop.f32.mrb[0].mxu0
    %604 = vmatprep.mubr.bf16.mxu0 0
    %605 = vmatmul.mubr.bf16.gmra.mrb[0].mxu0 %v486
    %v606 = vpop.f32.mrb[0].mxu0
    %v607 = vadd.f32 0.0, %v606
    %v608 = vpop.f32.mrb[0].mxu0
    %v609 = vpop.f32.mrb[0].mxu0
    %v610 = vadd.f32 0.0, %v609
    %v611 = vpop.f32.mrb[0].mxu0
    %612 = vmatprep.mubr.bf16.mxu0 0
    %613 = vmatmul.mubr.bf16.gmra.mrb[0].mxu0 %v487
    %v614 = vpop.f32.mrb[0].mxu0
    %v615 = vadd.f32 0.0, %v614
    %v616 = vpop.f32.mrb[0].mxu0
    %v617 = vpop.f32.mrb[0].mxu0
    %v618 = vadd.f32 0.0, %v617
    %v619 = vpop.f32.mrb[0].mxu0
    %620 = vmatprep.mubr.bf16.mxu0 0
    %621 = vmatmul.mubr.bf16.gmra.mrb[0].mxu0 %v488
    %v622 = vpop.f32.mrb[0].mxu0
    %v623 = vadd.f32 0.0, %v622
    %v624 = vpop.f32.mrb[0].mxu0
    %v625 = vpop.f32.mrb[0].mxu0
    %v626 = vadd.f32 0.0, %v625
    %v627 = vpop.f32.mrb[0].mxu0
    %628 = vmatprep.mubr.bf16.mxu0 0
    %629 = vmatmul.mubr.bf16.gmra.mrb[0].mxu0 %v489
    %v630 = vpop.f32.mrb[0].mxu0
    %v631 = vadd.f32 0.0, %v630
    %v632 = vpop.f32.mrb[0].mxu0
    %v633 = vpop.f32.mrb[0].mxu0
    %v634 = vadd.f32 0.0, %v633
    %v635 = vpop.f32.mrb[0].mxu0
    %636 = vmatprep.mubr.bf16.mxu0 0
    %637 = vmatmul.mubr.bf16.gmra.mrb[0].mxu0 %v490
    %v638 = vpop.f32.mrb[0].mxu0
    %v639 = vadd.f32 0.0, %v638
    %v640 = vpop.f32.mrb[0].mxu0
    %v641 = vpop.f32.mrb[0].mxu0
    %v642 = vadd.f32 0.0, %v641
    %v643 = vpop.f32.mrb[0].mxu0
    %644 = vmatprep.mubr.bf16.mxu0 0
    %645 = vmatmul.mubr.bf16.gmra.mrb[0].mxu0 %v491
    %v646 = vpop.f32.mrb[0].mxu0
    %v647 = vadd.f32 0.0, %v646
    %v648 = vpop.f32.mrb[0].mxu0
    %v649 = vpop.f32.mrb[0].mxu0
    %v650 = vadd.f32 0.0, %v649
    %v651 = vpop.f32.mrb[0].mxu0
    %652 = vdwg.mxu0
    %v653 = vpack.c.bf16 %v594, %v591
    %v654 = vpack.c.bf16 %v602, %v599
    %v655 = vpack.c.bf16 %v610, %v607
    %v656 = vpack.c.bf16 %v618, %v615
    %v657 = vpack.c.bf16 %v626, %v623
    %v658 = vpack.c.bf16 %v634, %v631
    %v659 = vpack.c.bf16 %v642, %v639
    %v660 = vpack.c.bf16 %v650, %v647
    %v661 = vld [vmem:[%s5] sm:$0x1]
    %v663 = vlaneseq
    %v664 = vshrl.u32 %v663, 7
    %v665 = vsub.s32 0, %v664
    %v666 = vrot.slane %v661, %v665
    %668 = vmatprep.subr.bf16.mxu0 0
    %669 = vmatpush1.bf16.msra.mxu0 %v653
    %670 = vmatprep.subr.bf16.mxu0 0
    %671 = vmatpush1.bf16.msra.mxu0 %v654
    %672 = vmatprep.subr.bf16.mxu0 0
    %673 = vmatpush1.bf16.msra.mxu0 %v655
    %674 = vmatprep.subr.bf16.mxu0 0
    %675 = vmatpush1.bf16.msra.mxu0 %v656
    %676 = vmatprep.subr.bf16.mxu0 0
    %677 = vmatpush1.bf16.msra.mxu0 %v657
    %678 = vmatprep.subr.bf16.mxu0 0
    %679 = vmatpush1.bf16.msra.mxu0 %v658
    %680 = vmatprep.subr.bf16.mxu0 0
    %681 = vmatpush1.bf16.msra.mxu0 %v659
    %682 = vmatprep.subr.bf16.mxu0 0
    %683 = vmatpush1.bf16.msra.mxu0 %v660
    %684 = vmatprep.subr.bf16.mxu0 0
    %685 = vmatpush1.bf16.msra.mxu0 0
    %686 = vmatprep.subr.bf16.mxu0 0
    %687 = vmatpush1.bf16.msra.mxu0 0
    %688 = vmatprep.subr.bf16.mxu0 0
    %689 = vmatpush1.bf16.msra.mxu0 0
    %690 = vmatprep.subr.bf16.mxu0 0
    %691 = vmatpush1.bf16.msra.mxu0 0
    %692 = vmatprep.subr.bf16.mxu0 0
    %693 = vmatpush1.bf16.msra.mxu0 0
    %694 = vmatprep.subr.bf16.mxu0 0
    %695 = vmatpush1.bf16.msra.mxu0 0
    %696 = vmatprep.subr.bf16.mxu0 0
    %697 = vmatpush1.bf16.msra.mxu0 0
    %698 = vmatprep.subr.bf16.mxu0 0
    %699 = vmatpush1.bf16.msra.mxu0 0
    %700 = vmatprep.mubr.bf16.mxu0 0
    %701 = vmatmul.mubr.bf16.gmra.mrb[0].mxu0 %v476
    %v702 = vpop.f32.mrb[0].mxu0
    %v703 = vadd.f32 %v666, %v702
    %v704 = vpop.f32.mrb[0].mxu0
    %v705 = vpop.f32.mrb[0].mxu0
    %v706 = vadd.f32 %v666, %v705
    %v707 = vpop.f32.mrb[0].mxu0
    %708 = vmatprep.mubr.bf16.mxu0 0
    %709 = vmatmul.mubr.bf16.gmra.mrb[0].mxu0 %v477
    %v710 = vpop.f32.mrb[0].mxu0
    %v711 = vadd.f32 %v666, %v710
    %v712 = vpop.f32.mrb[0].mxu0
    %v713 = vpop.f32.mrb[0].mxu0
    %v714 = vadd.f32 %v666, %v713
    %v715 = vpop.f32.mrb[0].mxu0
    %716 = vmatprep.mubr.bf16.mxu0 0
    %717 = vmatmul.mubr.bf16.gmra.mrb[0].mxu0 %v478
    %v718 = vpop.f32.mrb[0].mxu0
    %v719 = vadd.f32 %v666, %v718
    %v720 = vpop.f32.mrb[0].mxu0
    %v721 = vpop.f32.mrb[0].mxu0
    %v722 = vadd.f32 %v666, %v721
    %v723 = vpop.f32.mrb[0].mxu0
    %724 = vmatprep.mubr.bf16.mxu0 0
    %725 = vmatmul.mubr.bf16.gmra.mrb[0].mxu0 %v479
    %v726 = vpop.f32.mrb[0].mxu0
    %v727 = vadd.f32 %v666, %v726
    %v728 = vpop.f32.mrb[0].mxu0
    %v729 = vpop.f32.mrb[0].mxu0
    %v730 = vadd.f32 %v666, %v729
    %v731 = vpop.f32.mrb[0].mxu0
    %732 = vmatprep.mubr.bf16.mxu0 0
    %733 = vmatmul.mubr.bf16.gmra.mrb[0].mxu0 %v480
    %v734 = vpop.f32.mrb[0].mxu0
    %v735 = vadd.f32 %v666, %v734
    %v736 = vpop.f32.mrb[0].mxu0
    %v737 = vpop.f32.mrb[0].mxu0
    %v738 = vadd.f32 %v666, %v737
    %v739 = vpop.f32.mrb[0].mxu0
    %740 = vmatprep.mubr.bf16.mxu0 0
    %741 = vmatmul.mubr.bf16.gmra.mrb[0].mxu0 %v481
    %v742 = vpop.f32.mrb[0].mxu0
    %v743 = vadd.f32 %v666, %v742
    %v744 = vpop.f32.mrb[0].mxu0
    %v745 = vpop.f32.mrb[0].mxu0
    %v746 = vadd.f32 %v666, %v745
    %v747 = vpop.f32.mrb[0].mxu0
    %748 = vmatprep.mubr.bf16.mxu0 0
    %749 = vmatmul.mubr.bf16.gmra.mrb[0].mxu0 %v482
    %v750 = vpop.f32.mrb[0].mxu0
    %v751 = vadd.f32 %v666, %v750
    %v752 = vpop.f32.mrb[0].mxu0
    %v753 = vpop.f32.mrb[0].mxu0
    %v754 = vadd.f32 %v666, %v753
    %v755 = vpop.f32.mrb[0].mxu0
    %756 = vmatprep.mubr.bf16.mxu0 0
    %757 = vmatmul.mubr.bf16.gmra.mrb[0].mxu0 %v483
    %v758 = vpop.f32.mrb[0].mxu0
    %v759 = vadd.f32 %v666, %v758
    %v760 = vpop.f32.mrb[0].mxu0
    %v761 = vpop.f32.mrb[0].mxu0
    %v762 = vadd.f32 %v666, %v761
    %v763 = vpop.f32.mrb[0].mxu0
    %764 = vdwg.mxu0
    %v765 = vmax.f32 %v703, 0.0
    %v766 = vmax.f32 %v706, 0.0
    %v767 = vmax.f32 %v711, 0.0
    %v768 = vmax.f32 %v714, 0.0
    %v769 = vmax.f32 %v719, 0.0
    %v770 = vmax.f32 %v722, 0.0
    %v771 = vmax.f32 %v727, 0.0
    %v772 = vmax.f32 %v730, 0.0
    %v773 = vmax.f32 %v735, 0.0
    %v774 = vmax.f32 %v738, 0.0
    %v775 = vmax.f32 %v743, 0.0
    %v776 = vmax.f32 %v746, 0.0
    %v777 = vmax.f32 %v751, 0.0
    %v778 = vmax.f32 %v754, 0.0
    %v779 = vmax.f32 %v759, 0.0
    %v780 = vmax.f32 %v762, 0.0
    %v781 = vpack.c.bf16 %v766, %v765
    %v782 = vpack.c.bf16 %v768, %v767
    %v783 = vpack.c.bf16 %v770, %v769
    %v784 = vpack.c.bf16 %v772, %v771
    %v785 = vpack.c.bf16 %v774, %v773
    %v786 = vpack.c.bf16 %v776, %v775
    %v787 = vpack.c.bf16 %v778, %v777
    %v788 = vpack.c.bf16 %v780, %v779
    %v789 = vld [vmem:[#allocation11] sm:$0xf]
    %v790 = vld [vmem:[#allocation11 + $0x4] sm:$0xf]
    %v791 = vld [vmem:[#allocation11 + $0x8] sm:$0xf]
    %v792 = vld [vmem:[#allocation11 + $0xc] sm:$0xf]
    %v793 = vld [vmem:[#allocation11 + $0x10] sm:$0xf]
    %v794 = vld [vmem:[#allocation11 + $0x14] sm:$0xf]
    %v795 = vld [vmem:[#allocation11 + $0x18] sm:$0xf]
    %v796 = vld [vmem:[#allocation11 + $0x1c] sm:$0xf]
    %v797 = vld [vmem:[#allocation11 + $0x20] sm:$0xf]
    %v798 = vld [vmem:[#allocation11 + $0x24] sm:$0xf]
    %v799 = vld [vmem:[#allocation11 + $0x28] sm:$0xf]
    %v800 = vld [vmem:[#allocation11 + $0x2c] sm:$0xf]
    %v801 = vld [vmem:[#allocation11 + $0x30] sm:$0xf]
    %v802 = vld [vmem:[#allocation11 + $0x34] sm:$0xf]
    %v803 = vld [vmem:[#allocation11 + $0x38] sm:$0xf]
    %v804 = vld [vmem:[#allocation11 + $0x3c] sm:$0xf]
    %v821 = vunpack.c.l.b16 %v789
    %v822 = vunpack.c.l.b16 %v790
    %v823 = vunpack.c.l.b16 %v791
    %v824 = vunpack.c.l.b16 %v792
    %v825 = vunpack.c.l.b16 %v793
    %v826 = vunpack.c.l.b16 %v794
    %v827 = vunpack.c.l.b16 %v795
    %v828 = vunpack.c.l.b16 %v796
    %v829 = vunpack.c.l.b16 %v797
    %v830 = vunpack.c.l.b16 %v798
    %v831 = vunpack.c.l.b16 %v799
    %v832 = vunpack.c.l.b16 %v800
    %v833 = vunpack.c.l.b16 %v801
    %v834 = vunpack.c.l.b16 %v802
    %v835 = vunpack.c.l.b16 %v803
    %v836 = vunpack.c.l.b16 %v804
    %v837 = vpack.c.b16 %v822, %v821
    %v838 = vpack.c.b16 %v824, %v823
    %v839 = vpack.c.b16 %v826, %v825
    %v840 = vpack.c.b16 %v828, %v827
    %v841 = vpack.c.b16 %v830, %v829
    %v842 = vpack.c.b16 %v832, %v831
    %v843 = vpack.c.b16 %v834, %v833
    %v844 = vpack.c.b16 %v836, %v835
    %853 = vmatprep.subr.bf16.mxu0 0
    %854 = vmatpush1.bf16.msra.mxu0 %v837
    %855 = vmatprep.subr.bf16.mxu0 0
    %856 = vmatpush1.bf16.msra.mxu0 %v838
    %857 = vmatprep.subr.bf16.mxu0 0
    %858 = vmatpush1.bf16.msra.mxu0 %v839
    %859 = vmatprep.subr.bf16.mxu0 0
    %860 = vmatpush1.bf16.msra.mxu0 %v840
    %861 = vmatprep.subr.bf16.mxu0 0
    %862 = vmatpush1.bf16.msra.mxu0 %v841
    %863 = vmatprep.subr.bf16.mxu0 0
    %864 = vmatpush1.bf16.msra.mxu0 %v842
    %865 = vmatprep.subr.bf16.mxu0 0
    %866 = vmatpush1.bf16.msra.mxu0 %v843
    %867 = vmatprep.subr.bf16.mxu0 0
    %868 = vmatpush1.bf16.msra.mxu0 %v844
    %869 = vmatprep.subr.bf16.mxu0 0
    %870 = vmatpush1.bf16.msra.mxu0 0
    %871 = vmatprep.subr.bf16.mxu0 0
    %872 = vmatpush1.bf16.msra.mxu0 0
    %873 = vmatprep.subr.bf16.mxu0 0
    %874 = vmatpush1.bf16.msra.mxu0 0
    %875 = vmatprep.subr.bf16.mxu0 0
    %876 = vmatpush1.bf16.msra.mxu0 0
    %877 = vmatprep.subr.bf16.mxu0 0
    %878 = vmatpush1.bf16.msra.mxu0 0
    %879 = vmatprep.subr.bf16.mxu0 0
    %880 = vmatpush1.bf16.msra.mxu0 0
    %881 = vmatprep.subr.bf16.mxu0 0
    %882 = vmatpush1.bf16.msra.mxu0 0
    %883 = vmatprep.subr.bf16.mxu0 0
    %884 = vmatpush1.bf16.msra.mxu0 0
    %885 = vmatprep.mubr.bf16.mxu0 0
    %886 = vmatmul.mubr.bf16.gmra.mrb[0].mxu0 %v781
    %v887 = vpop.f32.mrb[0].mxu0
    %v888 = vadd.f32 0.0, %v887
    %v889 = vpop.f32.mrb[0].mxu0
    %v890 = vpop.f32.mrb[0].mxu0
    %v891 = vadd.f32 0.0, %v890
    %v892 = vpop.f32.mrb[0].mxu0
    %893 = vmatprep.mubr.bf16.mxu0 0
    %894 = vmatmul.mubr.bf16.gmra.mrb[0].mxu0 %v782
    %v895 = vpop.f32.mrb[0].mxu0
    %v896 = vadd.f32 0.0, %v895
    %v897 = vpop.f32.mrb[0].mxu0
    %v898 = vpop.f32.mrb[0].mxu0
    %v899 = vadd.f32 0.0, %v898
    %v900 = vpop.f32.mrb[0].mxu0
    %901 = vmatprep.mubr.bf16.mxu0 0
    %902 = vmatmul.mubr.bf16.gmra.mrb[0].mxu0 %v783
    %v903 = vpop.f32.mrb[0].mxu0
    %v904 = vadd.f32 0.0, %v903
    %v905 = vpop.f32.mrb[0].mxu0
    %v906 = vpop.f32.mrb[0].mxu0
    %v907 = vadd.f32 0.0, %v906
    %v908 = vpop.f32.mrb[0].mxu0
    %909 = vmatprep.mubr.bf16.mxu0 0
    %910 = vmatmul.mubr.bf16.gmra.mrb[0].mxu0 %v784
    %v911 = vpop.f32.mrb[0].mxu0
    %v912 = vadd.f32 0.0, %v911
    %v913 = vpop.f32.mrb[0].mxu0
    %v914 = vpop.f32.mrb[0].mxu0
    %v915 = vadd.f32 0.0, %v914
    %v916 = vpop.f32.mrb[0].mxu0
    %917 = vmatprep.mubr.bf16.mxu0 0
    %918 = vmatmul.mubr.bf16.gmra.mrb[0].mxu0 %v785
    %v919 = vpop.f32.mrb[0].mxu0
    %v920 = vadd.f32 0.0, %v919
    %v921 = vpop.f32.mrb[0].mxu0
    %v922 = vpop.f32.mrb[0].mxu0
    %v923 = vadd.f32 0.0, %v922
    %v924 = vpop.f32.mrb[0].mxu0
    %925 = vmatprep.mubr.bf16.mxu0 0
    %926 = vmatmul.mubr.bf16.gmra.mrb[0].mxu0 %v786
    %v927 = vpop.f32.mrb[0].mxu0
    %v928 = vadd.f32 0.0, %v927
    %v929 = vpop.f32.mrb[0].mxu0
    %v930 = vpop.f32.mrb[0].mxu0
    %v931 = vadd.f32 0.0, %v930
    %v932 = vpop.f32.mrb[0].mxu0
    %933 = vmatprep.mubr.bf16.mxu0 0
    %934 = vmatmul.mubr.bf16.gmra.mrb[0].mxu0 %v787
    %v935 = vpop.f32.mrb[0].mxu0
    %v936 = vadd.f32 0.0, %v935
    %v937 = vpop.f32.mrb[0].mxu0
    %v938 = vpop.f32.mrb[0].mxu0
    %v939 = vadd.f32 0.0, %v938
    %v940 = vpop.f32.mrb[0].mxu0
    %941 = vmatprep.mubr.bf16.mxu0 0
    %942 = vmatmul.mubr.bf16.gmra.mrb[0].mxu0 %v788
    %v943 = vpop.f32.mrb[0].mxu0
    %v944 = vadd.f32 0.0, %v943
    %v945 = vpop.f32.mrb[0].mxu0
    %v946 = vpop.f32.mrb[0].mxu0
    %v947 = vadd.f32 0.0, %v946
    %v948 = vpop.f32.mrb[0].mxu0
    %949 = vdwg.mxu0
    %v950 = vpack.c.bf16 %v891, %v888
    %v951 = vpack.c.bf16 %v899, %v896
    %v952 = vpack.c.bf16 %v907, %v904
    %v953 = vpack.c.bf16 %v915, %v912
    %v954 = vpack.c.bf16 %v923, %v920
    %v955 = vpack.c.bf16 %v931, %v928
    %v956 = vpack.c.bf16 %v939, %v936
    %v957 = vpack.c.bf16 %v947, %v944
    %v958 = vld [vmem:[%s7] sm:$0x1]
    %v960 = vlaneseq
    %v961 = vshrl.u32 %v960, 7
    %v962 = vsub.s32 0, %v961
    %v963 = vrot.slane %v958, %v962
    %965 = vmatprep.subr.bf16.mxu0 0
    %966 = vmatpush1.bf16.msra.mxu0 %v950
    %967 = vmatprep.subr.bf16.mxu0 0
    %968 = vmatpush1.bf16.msra.mxu0 %v951
    %969 = vmatprep.subr.bf16.mxu0 0
    %970 = vmatpush1.bf16.msra.mxu0 %v952
    %971 = vmatprep.subr.bf16.mxu0 0
    %972 = vmatpush1.bf16.msra.mxu0 %v953
    %973 = vmatprep.subr.bf16.mxu0 0
    %974 = vmatpush1.bf16.msra.mxu0 %v954
    %975 = vmatprep.subr.bf16.mxu0 0
    %976 = vmatpush1.bf16.msra.mxu0 %v955
    %977 = vmatprep.subr.bf16.mxu0 0
    %978 = vmatpush1.bf16.msra.mxu0 %v956
    %979 = vmatprep.subr.bf16.mxu0 0
    %980 = vmatpush1.bf16.msra.mxu0 %v957
    %981 = vmatprep.subr.bf16.mxu0 0
    %982 = vmatpush1.bf16.msra.mxu0 0
    %983 = vmatprep.subr.bf16.mxu0 0
    %984 = vmatpush1.bf16.msra.mxu0 0
    %985 = vmatprep.subr.bf16.mxu0 0
    %986 = vmatpush1.bf16.msra.mxu0 0
    %987 = vmatprep.subr.bf16.mxu0 0
    %988 = vmatpush1.bf16.msra.mxu0 0
    %989 = vmatprep.subr.bf16.mxu0 0
    %990 = vmatpush1.bf16.msra.mxu0 0
    %991 = vmatprep.subr.bf16.mxu0 0
    %992 = vmatpush1.bf16.msra.mxu0 0
    %993 = vmatprep.subr.bf16.mxu0 0
    %994 = vmatpush1.bf16.msra.mxu0 0
    %995 = vmatprep.subr.bf16.mxu0 0
    %996 = vmatpush1.bf16.msra.mxu0 0
    %997 = vmatprep.mubr.bf16.mxu0 0
    %998 = vmatmul.mubr.bf16.gmra.mrb[0].mxu0 %v476
    %v999 = vpop.f32.mrb[0].mxu0
    %v1000 = vadd.f32 %v963, %v999
    %v1001 = vpop.f32.mrb[0].mxu0
    %v1002 = vpop.f32.mrb[0].mxu0
    %v1003 = vadd.f32 %v963, %v1002
    %v1004 = vpop.f32.mrb[0].mxu0
    %1005 = vmatprep.mubr.bf16.mxu0 0
    %1006 = vmatmul.mubr.bf16.gmra.mrb[0].mxu0 %v477
    %v1007 = vpop.f32.mrb[0].mxu0
    %v1008 = vadd.f32 %v963, %v1007
    %v1009 = vpop.f32.mrb[0].mxu0
    %v1010 = vpop.f32.mrb[0].mxu0
    %v1011 = vadd.f32 %v963, %v1010
    %v1012 = vpop.f32.mrb[0].mxu0
    %1013 = vmatprep.mubr.bf16.mxu0 0
    %1014 = vmatmul.mubr.bf16.gmra.mrb[0].mxu0 %v478
    %v1015 = vpop.f32.mrb[0].mxu0
    %v1016 = vadd.f32 %v963, %v1015
    %v1017 = vpop.f32.mrb[0].mxu0
    %v1018 = vpop.f32.mrb[0].mxu0
    %v1019 = vadd.f32 %v963, %v1018
    %v1020 = vpop.f32.mrb[0].mxu0
    %1021 = vmatprep.mubr.bf16.mxu0 0
    %1022 = vmatmul.mubr.bf16.gmra.mrb[0].mxu0 %v479
    %v1023 = vpop.f32.mrb[0].mxu0
    %v1024 = vadd.f32 %v963, %v1023
    %v1025 = vpop.f32.mrb[0].mxu0
    %v1026 = vpop.f32.mrb[0].mxu0
    %v1027 = vadd.f32 %v963, %v1026
    %v1028 = vpop.f32.mrb[0].mxu0
    %1029 = vmatprep.mubr.bf16.mxu0 0
    %1030 = vmatmul.mubr.bf16.gmra.mrb[0].mxu0 %v480
    %v1031 = vpop.f32.mrb[0].mxu0
    %v1032 = vadd.f32 %v963, %v1031
    %v1033 = vpop.f32.mrb[0].mxu0
    %v1034 = vpop.f32.mrb[0].mxu0
    %v1035 = vadd.f32 %v963, %v1034
    %v1036 = vpop.f32.mrb[0].mxu0
    %1037 = vmatprep.mubr.bf16.mxu0 0
    %1038 = vmatmul.mubr.bf16.gmra.mrb[0].mxu0 %v481
    %v1039 = vpop.f32.mrb[0].mxu0
    %v1040 = vadd.f32 %v963, %v1039
    %v1041 = vpop.f32.mrb[0].mxu0
    %v1042 = vpop.f32.mrb[0].mxu0
    %v1043 = vadd.f32 %v963, %v1042
    %v1044 = vpop.f32.mrb[0].mxu0
    %1045 = vmatprep.mubr.bf16.mxu0 0
    %1046 = vmatmul.mubr.bf16.gmra.mrb[0].mxu0 %v482
    %v1047 = vpop.f32.mrb[0].mxu0
    %v1048 = vadd.f32 %v963, %v1047
    %v1049 = vpop.f32.mrb[0].mxu0
    %v1050 = vpop.f32.mrb[0].mxu0
    %v1051 = vadd.f32 %v963, %v1050
    %v1052 = vpop.f32.mrb[0].mxu0
    %1053 = vmatprep.mubr.bf16.mxu0 0
    %1054 = vmatmul.mubr.bf16.gmra.mrb[0].mxu0 %v483
    %v1055 = vpop.f32.mrb[0].mxu0
    %v1056 = vadd.f32 %v963, %v1055
    %v1057 = vpop.f32.mrb[0].mxu0
    %v1058 = vpop.f32.mrb[0].mxu0
    %v1059 = vadd.f32 %v963, %v1058
    %v1060 = vpop.f32.mrb[0].mxu0
    %1061 = vdwg.mxu0
    %v1062 = vpack.c.bf16 %v1003, %v1000
    %v1063 = vpack.c.bf16 %v1011, %v1008
    %v1064 = vpack.c.bf16 %v1019, %v1016
    %v1065 = vpack.c.bf16 %v1027, %v1024
    %v1066 = vpack.c.bf16 %v1035, %v1032
    %v1067 = vpack.c.bf16 %v1043, %v1040
    %v1068 = vpack.c.bf16 %v1051, %v1048
    %v1069 = vpack.c.bf16 %v1059, %v1056
    %v1078 = vunpack.c.l.b16 %v1062
    %v1079 = vunpack.c.h.b16 %v1062
    %v1080 = vunpack.c.l.b16 %v1063
    %v1081 = vunpack.c.h.b16 %v1063
    %v1082 = vunpack.c.l.b16 %v1064
    %v1083 = vunpack.c.h.b16 %v1064
    %v1084 = vunpack.c.l.b16 %v1065
    %v1085 = vunpack.c.h.b16 %v1065
    %v1086 = vunpack.c.l.b16 %v1066
    %v1087 = vunpack.c.h.b16 %v1066
    %v1088 = vunpack.c.l.b16 %v1067
    %v1089 = vunpack.c.h.b16 %v1067
    %v1090 = vunpack.c.l.b16 %v1068
    %v1091 = vunpack.c.h.b16 %v1068
    %v1092 = vunpack.c.l.b16 %v1069
    %v1093 = vunpack.c.h.b16 %v1069
    %v1094 = vpack.c.b16 %v1078, %v1078
    %v1095 = vpack.c.b16 %v1079, %v1079
    %v1096 = vpack.c.b16 %v1080, %v1080
    %v1097 = vpack.c.b16 %v1081, %v1081
    %v1098 = vpack.c.b16 %v1082, %v1082
    %v1099 = vpack.c.b16 %v1083, %v1083
    %v1100 = vpack.c.b16 %v1084, %v1084
    %v1101 = vpack.c.b16 %v1085, %v1085
    %v1102 = vpack.c.b16 %v1086, %v1086
    %v1103 = vpack.c.b16 %v1087, %v1087
    %v1104 = vpack.c.b16 %v1088, %v1088
    %v1105 = vpack.c.b16 %v1089, %v1089
    %v1106 = vpack.c.b16 %v1090, %v1090
    %v1107 = vpack.c.b16 %v1091, %v1091
    %v1108 = vpack.c.b16 %v1092, %v1092
    %v1109 = vpack.c.b16 %v1093, %v1093
    %1126 = vst [vmem:[#allocation13] sm:$0xf] %v1094
    %1127 = vst [vmem:[#allocation13 + $0x4] sm:$0xf] %v1095
    %1128 = vst [vmem:[#allocation13 + $0x8] sm:$0xf] %v1096
    %1129 = vst [vmem:[#allocation13 + $0xc] sm:$0xf] %v1097
    %1130 = vst [vmem:[#allocation13 + $0x10] sm:$0xf] %v1098
    %1131 = vst [vmem:[#allocation13 + $0x14] sm:$0xf] %v1099
    %1132 = vst [vmem:[#allocation13 + $0x18] sm:$0xf] %v1100
    %1133 = vst [vmem:[#allocation13 + $0x1c] sm:$0xf] %v1101
    %1134 = vst [vmem:[#allocation13 + $0x20] sm:$0xf] %v1102
    %1135 = vst [vmem:[#allocation13 + $0x24] sm:$0xf] %v1103
    %1136 = vst [vmem:[#allocation13 + $0x28] sm:$0xf] %v1104
    %1137 = vst [vmem:[#allocation13 + $0x2c] sm:$0xf] %v1105
    %1138 = vst [vmem:[#allocation13 + $0x30] sm:$0xf] %v1106
    %1139 = vst [vmem:[#allocation13 + $0x34] sm:$0xf] %v1107
    %1140 = vst [vmem:[#allocation13 + $0x38] sm:$0xf] %v1108
    %1141 = vst [vmem:[#allocation13 + $0x3c] sm:$0xf] %v1109
    // Predicated region
    $region50: #{tpu_custom_call.1} parent=1 // pred_check
      _
    $region51: #{tpu_custom_call.1} parent=1 // pred_check_branch
      %1143 = sbr.rel (0) target = $region53
    $region52: #{tpu_custom_call.1} parent=1 // pred_region
      %s1145 = ssub.s32 1024, 1024
      %1146 = vsyncadd [#allocation7], %s1145
      %s1147 = sshll.u32 [#allocation13], 4
      %s1148 = int_to_ptr.vmem [resolvable:$true] %s1147
      %1153 = dma.vmem_to_hbm [thread:$0]  %s1148, 1024, %s8, [#allocation7], 64, 64, 4
    $region53: #{tpu_custom_call.1} parent=1 // pred_fallthru
      _
    // Predicated region
    $region54: #{tpu_custom_call.1} parent=1 // pred_check
      _
    $region55: #{tpu_custom_call.1} parent=1 // pred_check_branch
      %1155 = sbr.rel (0) target = $region57
    $region56: #{tpu_custom_call.1} parent=1 // pred_region
      %1156 = dma.done [#allocation7], 1024
    $region57: #{tpu_custom_call.1} parent=1 // pred_fallthru
      _
    %1157 = vsyncpa [#allocation6], 1
    %1158 = vsyncpa [#allocation9], 1
    %1159 = vsyncpa [#allocation12], 1
    %1160 = vsyncpa [#allocation7], 1
  %1161 = vsyncmov [#allocation3]
  %s1162 = vpop.sfrf %1161
  %p1163 = scmp.eq.s32.totalorder %s1162, 0
  %p1164 = pneg %p1163
  %1166 = shalt.err (%p1164)

</llo_original>
